<compile_context>
chip_gen: v6e
topology: v6e:2x2x1
jax: 0.10.0
libtpu: 0.0.40
codegen_flags: <defaults>
</compile_context>

<pallas_src>
import functools
import math

import jax
import jax.numpy as jnp
import numpy as np
from jax.experimental import pallas as pl
from jax.experimental.pallas import tpu as pltpu


# --------------------------------------------------------------------------
# Kernel 1: adaLN-LN1 + QKV projection + RoPE, one grid step = (b, seq-tile)
# --------------------------------------------------------------------------
def qkv_rope_kernel(mod_ref, x_ref, cos_ref, sin_ref, ln1_ref, wqkv_ref,
                    q_ref, k_ref, v_ref, *, n_heads):
    f32 = jnp.float32
    bf16 = jnp.bfloat16
    T = x_ref.shape[1]
    D = x_ref.shape[2]
    hd = D // n_heads

    mod = mod_ref[0].astype(f32)                       # [6, D]
    shift_msa, scale_msa = mod[0:1], mod[1:2]

    # LayerNorm (no bias) fused with adaLN modulate: LN(x)*w*(1+scale) + shift
    x = x_ref[0].astype(f32)
    mu = jnp.mean(x, axis=-1, keepdims=True)
    var = jnp.mean((x - mu) * (x - mu), axis=-1, keepdims=True)
    h = (x - mu) * jax.lax.rsqrt(var + 1e-5) * (ln1_ref[...].astype(f32)
                                                * (1.0 + scale_msa)) + shift_msa

    qkv = jnp.dot(h.astype(bf16), wqkv_ref[...], preferred_element_type=f32)  # [T, 3D]

    cos = cos_ref[...].astype(f32)                     # [T, hd]
    sin = sin_ref[...].astype(f32)

    def rope(t2d):                                     # rotate-half RoPE per head
        t3 = t2d.reshape(T, n_heads, hd)
        rot = jnp.concatenate([-t3[..., hd // 2:], t3[..., :hd // 2]], axis=-1)
        return (t3 * cos[:, None, :] + rot * sin[:, None, :]).reshape(T, D)

    q_ref[0] = rope(qkv[:, :D]).astype(q_ref.dtype)
    k_ref[0] = rope(qkv[:, D:2 * D]).astype(k_ref.dtype)
    v_ref[0] = qkv[:, 2 * D:].astype(v_ref.dtype)


# --------------------------------------------------------------------------
# Kernel 2: flash attention + out-proj + residual + LN2 + MLP
#   one grid step = (batch b, query-tile qi, kv-tile ki); ki is innermost.
# --------------------------------------------------------------------------
def flash_block_kernel(mod_ref, x_ref, q_ref, k_ref, v_ref,
                       ln2_ref, wo_ref, w1_ref, b1_ref, w2_ref, b2_ref,
                       o_ref,
                       q_scr, acc_scr, m_scr, l_scr, *, n_heads):
    f32 = jnp.float32
    bf16 = jnp.bfloat16
    ki = pl.program_id(2)
    nk = pl.num_programs(2)
    tq = q_ref.shape[1]
    tk = k_ref.shape[1]
    D = q_ref.shape[2]
    hd = D // n_heads
    sm_scale = 1.0 / math.sqrt(hd)

    # ---- query-tile setup (once per (b, qi)) -------------------------------
    @pl.when(ki == 0)
    def _init():
        q_scr[...] = jnp.transpose(q_ref[0].reshape(tq, n_heads, hd), (1, 0, 2))
        acc_scr[...] = jnp.zeros(acc_scr.shape, f32)
        m_scr[...] = jnp.full(m_scr.shape, -jnp.inf, f32)
        l_scr[...] = jnp.zeros(l_scr.shape, f32)

    # ---- online-softmax attention update for this KV block -----------------
    k3 = jnp.transpose(k_ref[0].reshape(tk, n_heads, hd), (1, 0, 2))   # [nh, tk, hd] bf16
    v3 = jnp.transpose(v_ref[0].reshape(tk, n_heads, hd), (1, 0, 2))   # [nh, tk, hd] bf16

    s = jnp.einsum('hqd,hkd->hqk', q_scr[...], k3,
                   preferred_element_type=f32) * sm_scale              # [nh, tq, tk]
    m_prev = m_scr[...]
    m_new = jnp.maximum(m_prev, jnp.max(s, axis=-1, keepdims=True))
    alpha = jnp.exp(m_prev - m_new)
    p = jnp.exp(s - m_new)
    l_scr[...] = alpha * l_scr[...] + jnp.sum(p, axis=-1, keepdims=True)
    acc_scr[...] = alpha * acc_scr[...] + jnp.einsum(
        'hqk,hkd->hqd', p.astype(bf16), v3, preferred_element_type=f32)
    m_scr[...] = m_new

    # ---- finalize: out-proj, residual, LN2+mod, MLP (once per (b, qi)) -----
    @pl.when(ki == nk - 1)
    def _finalize():
        mod = mod_ref[0].astype(f32)                                   # [6, D]
        gate_msa = mod[2:3]
        shift_mlp, scale_mlp, gate_mlp = mod[3:4], mod[4:5], mod[5:6]

        inv_l = pl.reciprocal(l_scr[...], approx=True)
        ctx = acc_scr[...] * inv_l                                     # [nh, tq, hd]
        attn = jnp.transpose(ctx, (1, 0, 2)).reshape(tq, D)            # [tq, D]
        ao = jnp.dot(attn.astype(bf16), wo_ref[...], preferred_element_type=f32)

        x = x_ref[0].astype(f32)
        x1 = x + gate_msa * ao                                         # inference bias-dropout-add

        mu = jnp.mean(x1, axis=-1, keepdims=True)
        var = jnp.mean((x1 - mu) * (x1 - mu), axis=-1, keepdims=True)
        h2 = (x1 - mu) * jax.lax.rsqrt(var + 1e-5) * (ln2_ref[...].astype(f32)
                                                      * (1.0 + scale_mlp)) + shift_mlp

        ff = jnp.dot(h2.astype(bf16), w1_ref[...],
                     preferred_element_type=f32) + b1_ref[...].astype(f32)
        c0 = 0.7978845608028654                                        # sqrt(2/pi)
        ff = 0.5 * ff * (1.0 + jnp.tanh(c0 * (ff + 0.044715 * ff * ff * ff)))
        ff2 = jnp.dot(ff.astype(bf16), w2_ref[...],
                      preferred_element_type=f32) + b2_ref[...].astype(f32)

        o_ref[0] = (x1 + gate_mlp * ff2).astype(o_ref.dtype)


# --------------------------------------------------------------------------
# Wrapper
# --------------------------------------------------------------------------
def ada_transformer_block(x, c, cos, sin, params, *, n_heads,
                          ts=None, tq=None, tk=None):
    B, S, D = x.shape
    H = params["w_mlp1"].shape[-1]
    hd = D // n_heads
    assert D % n_heads == 0 and hd % 2 == 0
    ts = min(ts or 256, S)     # production: 256-512 rows, D/H multiples of 128
    tq = min(tq or 256, S)
    tk = min(tk or 256, S)
    assert S % ts == 0 and S % tq == 0 and S % tk == 0
    f32 = jnp.float32

    # adaLN modulation hoisted to XLA: [B, 6, D]
    mod = (c.astype(f32) @ params["w_ada"].astype(f32)
           + params["b_ada"].astype(f32)).reshape(B, 6, D)

    # ---- stage 1: LN1+mod, QKV projection, RoPE -> bf16 [B, S, D] slabs -----
    q, k, v = pl.pallas_call(
        functools.partial(qkv_rope_kernel, n_heads=n_heads),
        out_shape=(jax.ShapeDtypeStruct((B, S, D), jnp.bfloat16),
                   jax.ShapeDtypeStruct((B, S, D), jnp.bfloat16),
                   jax.ShapeDtypeStruct((B, S, D), jnp.bfloat16)),
        grid=(B, S // ts),
        in_specs=[
            pl.BlockSpec((1, 6, D), lambda b, si: (b, 0, 0)),     # mod
            pl.BlockSpec((1, ts, D), lambda b, si: (b, si, 0)),   # x rows
            pl.BlockSpec((ts, hd), lambda b, si: (si, 0)),        # cos
            pl.BlockSpec((ts, hd), lambda b, si: (si, 0)),        # sin
            pl.BlockSpec((1, D), lambda b, si: (0, 0)),           # ln1_w
            pl.BlockSpec((D, 3 * D), lambda b, si: (0, 0)),       # w_qkv (bf16)
        ],
        out_specs=(pl.BlockSpec((1, ts, D), lambda b, si: (b, si, 0)),
                   pl.BlockSpec((1, ts, D), lambda b, si: (b, si, 0)),
                   pl.BlockSpec((1, ts, D), lambda b, si: (b, si, 0))),
        compiler_params=pltpu.CompilerParams(
            dimension_semantics=("parallel", "parallel")),
    )(mod, x, cos, sin, params["ln1_w"], params["w_qkv"])

    # ---- stage 2: flash attention + out-proj + residual + LN2 + MLP ---------
    return pl.pallas_call(
        functools.partial(flash_block_kernel, n_heads=n_heads),
        out_shape=jax.ShapeDtypeStruct((B, S, D), x.dtype),
        grid=(B, S // tq, S // tk),
        in_specs=[
            pl.BlockSpec((1, 6, D), lambda b, qi, ki: (b, 0, 0)),     # mod
            pl.BlockSpec((1, tq, D), lambda b, qi, ki: (b, qi, 0)),   # x (residual)
            pl.BlockSpec((1, tq, D), lambda b, qi, ki: (b, qi, 0)),   # q
            pl.BlockSpec((1, tk, D), lambda b, qi, ki: (b, ki, 0)),   # k
            pl.BlockSpec((1, tk, D), lambda b, qi, ki: (b, ki, 0)),   # v
            pl.BlockSpec((1, D), lambda b, qi, ki: (0, 0)),           # ln2_w
            pl.BlockSpec((D, D), lambda b, qi, ki: (0, 0)),           # w_out (bf16)
            pl.BlockSpec((D, H), lambda b, qi, ki: (0, 0)),           # w_mlp1 (bf16)
            pl.BlockSpec((1, H), lambda b, qi, ki: (0, 0)),           # b_mlp1
            pl.BlockSpec((H, D), lambda b, qi, ki: (0, 0)),           # w_mlp2 (bf16)
            pl.BlockSpec((1, D), lambda b, qi, ki: (0, 0)),           # b_mlp2
        ],
        out_specs=pl.BlockSpec((1, tq, D), lambda b, qi, ki: (b, qi, 0)),
        scratch_shapes=[
            pltpu.VMEM((n_heads, tq, hd), jnp.bfloat16),   # head-major Q tile
            pltpu.VMEM((n_heads, tq, hd), jnp.float32),    # attention accumulator
            pltpu.VMEM((n_heads, tq, 1), jnp.float32),     # running max
            pltpu.VMEM((n_heads, tq, 1), jnp.float32),     # running denom
        ],
        compiler_params=pltpu.CompilerParams(
            dimension_semantics=("parallel", "parallel", "arbitrary")),
    )(mod, x, q, k, v,
      params["ln2_w"], params["w_out"],
      params["w_mlp1"], params["b_mlp1"], params["w_mlp2"], params["b_mlp2"])


# --------------------------------------------------------------------------
# Pure-JAX reference (f32 math, bf16-rounded matmul weights) for validation
# --------------------------------------------------------------------------
def reference(x, c, cos, sin, p, n_heads):
    B, S, D = x.shape
    hd = D // n_heads
    f32 = jnp.float32

    def ln(v, w):
        mu = v.mean(-1, keepdims=True)
        var = ((v - mu) ** 2).mean(-1, keepdims=True)
        return (v - mu) / jnp.sqrt(var + 1e-5) * w

    mod = c @ p["w_ada"] + p["b_ada"]                                 # [B, 6D]
    sm, cm, gm, sl, cl, gl = [mod[:, None, i * D:(i + 1) * D] for i in range(6)]

    w_qkv = p["w_qkv"].astype(f32)
    w_out = p["w_out"].astype(f32)
    w1, w2 = p["w_mlp1"].astype(f32), p["w_mlp2"].astype(f32)

    def rope(t):                                                      # [B,S,h,hd]
        t1, t2 = t[..., :hd // 2], t[..., hd // 2:]
        rot = jnp.concatenate([-t2, t1], -1)
        return t * cos[None, :, None, :] + rot * sin[None, :, None, :]

    x_skip = x
    h = ln(x, p["ln1_w"]) * (1 + cm) + sm
    qkv = (h @ w_qkv).reshape(B, S, 3, n_heads, hd)
    q, k, v = rope(qkv[:, :, 0]), rope(qkv[:, :, 1]), qkv[:, :, 2]
    scores = jnp.einsum("bqhd,bkhd->bhqk", q, k) / math.sqrt(hd)
    pr = jax.nn.softmax(scores, axis=-1)
    attn = jnp.einsum("bhqk,bkhd->bqhd", pr, v).reshape(B, S, D)
    x1 = x_skip + gm * (attn @ w_out)

    h2 = ln(x1, p["ln2_w"]) * (1 + cl) + sl
    ff = h2 @ w1 + p["b_mlp1"]
    k0 = 0.7978845608028654
    ff = 0.5 * ff * (1 + jnp.tanh(k0 * (ff + 0.044715 * ff ** 3)))
    ff = ff @ w2 + p["b_mlp2"]
    return x1 + gl * ff


# --------------------------------------------------------------------------
if __name__ == "__main__":
    B, S, D, n_heads, Cd, mlp_ratio = 2, 16, 32, 4, 16, 4
    hd = D // n_heads
    H = mlp_ratio * D
    ts = tq = tk = 8                      # exercises both tilings

    key = jax.random.PRNGKey(0)
    ks = jax.random.split(key, 12)
    f32, bf16 = jnp.float32, jnp.bfloat16

    x = jax.random.normal(ks[0], (B, S, D), f32)
    c = jax.random.normal(ks[1], (B, Cd), f32)

    # Rotary tables (rotate-half convention, head_dim hd), duplicated halves.
    pos = jnp.arange(S, dtype=f32)
    inv_freq = 1.0 / (10000.0 ** (jnp.arange(0, hd, 2, dtype=f32) / hd))
    freqs = pos[:, None] * inv_freq[None, :]                          # [S, hd/2]
    cos = jnp.concatenate([jnp.cos(freqs), jnp.cos(freqs)], -1)       # [S, hd]
    sin = jnp.concatenate([jnp.sin(freqs), jnp.sin(freqs)], -1)       # [S, hd]

    # Parameters. Matmul weights kept in bf16 (as fed to the kernel); the
    # PyTorch __init__ zero-inits adaLN — we use small random values so the
    # modulation path is exercised (forward semantics are unchanged).
    params = {
        "w_ada":  0.05 * jax.random.normal(ks[2], (Cd, 6 * D), f32),
        "b_ada":  0.05 * jax.random.normal(ks[3], (6 * D,), f32),
        "ln1_w":  jnp.ones((1, D), f32),
        "ln2_w":  jnp.ones((1, D), f32),
        "w_qkv":  (0.05 * jax.random.normal(ks[4], (D, 3 * D), f32)).astype(bf16),
        "w_out":  (0.05 * jax.random.normal(ks[5], (D, D), f32)).astype(bf16),
        "w_mlp1": (0.05 * jax.random.normal(ks[6], (D, H), f32)).astype(bf16),
        "b_mlp1": 0.05 * jax.random.normal(ks[7], (1, H), f32),
        "w_mlp2": (0.05 * jax.random.normal(ks[8], (H, D), f32)).astype(bf16),
        "b_mlp2": 0.05 * jax.random.normal(ks[9], (1, D), f32),
    }

    out = ada_transformer_block(x, c, cos, sin, params, n_heads=n_heads,
                                ts=ts, tq=tq, tk=tk)
    out = jax.block_until_ready(out)

    ref = reference(x, c, cos, sin, params, n_heads)
    np.testing.assert_allclose(np.asarray(out), np.asarray(ref), rtol=2e-2, atol=2e-2)
    print("KERNEL_OK")
</pallas_src>

<mosaic_0001>
module attributes {stable_mosaic.version = 11 : i64} {
  func.func @qkv_rope_kernel(%arg0: i32, %arg1: i32, %arg2: memref<1x6x32xf32, #tpu.memory_space<vmem>>, %arg3: memref<1x8x32xf32, #tpu.memory_space<vmem>>, %arg4: memref<8x8xf32, #tpu.memory_space<vmem>>, %arg5: memref<8x8xf32, #tpu.memory_space<vmem>>, %arg6: memref<1x32xf32, #tpu.memory_space<vmem>>, %arg7: memref<32x96xbf16, #tpu.memory_space<vmem>>, %arg8: memref<1x8x32xbf16, #tpu.memory_space<vmem>>, %arg9: memref<1x8x32xbf16, #tpu.memory_space<vmem>>, %arg10: memref<1x8x32xbf16, #tpu.memory_space<vmem>>) attributes {dimension_semantics = [#tpu.dimension_semantics<parallel>, #tpu.dimension_semantics<parallel>], iteration_bounds = array<i64: 2, 2>, scalar_prefetch = 0 : i64, scratch_operands = 0 : i64, tpu.core_type = #tpu.core_type<tc>, window_params = [{transform_indices = @transform_0, window_bounds = array<i64: 1, 6, 32>}, {transform_indices = @transform_1, window_bounds = array<i64: 1, 8, 32>}, {transform_indices = @transform_2, window_bounds = array<i64: 8, 8>}, {transform_indices = @transform_3, window_bounds = array<i64: 8, 8>}, {pipeline_mode = #tpu.pipeline_mode<synchronous>, transform_indices = @transform_4, window_bounds = array<i64: 1, 32>}, {pipeline_mode = #tpu.pipeline_mode<synchronous>, transform_indices = @transform_5, window_bounds = array<i64: 32, 96>}, {transform_indices = @transform_6, window_bounds = array<i64: 1, 8, 32>}, {transform_indices = @transform_7, window_bounds = array<i64: 1, 8, 32>}, {transform_indices = @transform_8, window_bounds = array<i64: 1, 8, 32>}]} {
    %c0 = arith.constant 0 : index
    %c0_0 = arith.constant 0 : index
    %c0_1 = arith.constant 0 : index
    %0 = vector.load %arg2[%c0, %c0_0, %c0_1] : memref<1x6x32xf32, #tpu.memory_space<vmem>>, vector<1x6x32xf32>
    %1 = vector.shape_cast %0 : vector<1x6x32xf32> to vector<6x32xf32>
    %2 = vector.extract_strided_slice %1 {offsets = [0, 0], sizes = [1, 32], strides = [1, 1]} : vector<6x32xf32> to vector<1x32xf32>
    %3 = vector.extract_strided_slice %1 {offsets = [1, 0], sizes = [1, 32], strides = [1, 1]} : vector<6x32xf32> to vector<1x32xf32>
    %c0_2 = arith.constant 0 : index
    %c0_3 = arith.constant 0 : index
    %c0_4 = arith.constant 0 : index
    %4 = vector.load %arg3[%c0_2, %c0_3, %c0_4] : memref<1x8x32xf32, #tpu.memory_space<vmem>>, vector<1x8x32xf32>
    %5 = vector.shape_cast %4 : vector<1x8x32xf32> to vector<8x32xf32>
    %cst = arith.constant dense<0.000000e+00> : vector<8xf32>
    %6 = vector.multi_reduction <add>, %5, %cst [1] : vector<8x32xf32> to vector<8xf32>
    %7 = vector.shape_cast %6 : vector<8xf32> to vector<8x1xf32>
    %cst_5 = arith.constant 3.200000e+01 : f32
    %8 = vector.broadcast %cst_5 : f32 to vector<8x1xf32>
    %9 = arith.divf %7, %8 : vector<8x1xf32>
    %10 = vector.broadcast %9 : vector<8x1xf32> to vector<8x32xf32>
    %11 = arith.subf %5, %10 : vector<8x32xf32>
    %12 = vector.broadcast %9 : vector<8x1xf32> to vector<8x32xf32>
    %13 = arith.subf %5, %12 : vector<8x32xf32>
    %14 = arith.mulf %11, %13 : vector<8x32xf32>
    %cst_6 = arith.constant dense<0.000000e+00> : vector<8xf32>
    %15 = vector.multi_reduction <add>, %14, %cst_6 [1] : vector<8x32xf32> to vector<8xf32>
    %16 = vector.shape_cast %15 : vector<8xf32> to vector<8x1xf32>
    %cst_7 = arith.constant 3.200000e+01 : f32
    %17 = vector.broadcast %cst_7 : f32 to vector<8x1xf32>
    %18 = arith.divf %16, %17 : vector<8x1xf32>
    %19 = vector.broadcast %9 : vector<8x1xf32> to vector<8x32xf32>
    %20 = arith.subf %5, %19 : vector<8x32xf32>
    %cst_8 = arith.constant 9.99999974E-6 : f32
    %21 = vector.broadcast %cst_8 : f32 to vector<8x1xf32>
    %22 = arith.addf %18, %21 : vector<8x1xf32>
    %23 = math.rsqrt %22 : vector<8x1xf32>
    %24 = vector.broadcast %23 : vector<8x1xf32> to vector<8x32xf32>
    %25 = arith.mulf %20, %24 : vector<8x32xf32>
    %c0_9 = arith.constant 0 : index
    %c0_10 = arith.constant 0 : index
    %26 = vector.load %arg6[%c0_9, %c0_10] : memref<1x32xf32, #tpu.memory_space<vmem>>, vector<1x32xf32>
    %cst_11 = arith.constant 1.000000e+00 : f32
    %27 = vector.broadcast %cst_11 : f32 to vector<1x32xf32>
    %28 = arith.addf %27, %3 : vector<1x32xf32>
    %29 = arith.mulf %26, %28 : vector<1x32xf32>
    %30 = vector.broadcast %29 : vector<1x32xf32> to vector<8x32xf32>
    %31 = arith.mulf %25, %30 : vector<8x32xf32>
    %32 = vector.broadcast %2 : vector<1x32xf32> to vector<8x32xf32>
    %33 = arith.addf %31, %32 : vector<8x32xf32>
    %34 = arith.truncf %33 : vector<8x32xf32> to vector<8x32xbf16>
    %c0_12 = arith.constant 0 : index
    %c0_13 = arith.constant 0 : index
    %35 = vector.load %arg7[%c0_12, %c0_13] : memref<32x96xbf16, #tpu.memory_space<vmem>>, vector<32x96xbf16>
    %cst_14 = arith.constant dense<0.000000e+00> : vector<8x96xf32>
    %36 = tpu.matmul %34, %35, %cst_14 {dimension_numbers = #tpu.dot_dimension_numbers<[1], [0], [0], [1], [0, 0, 1, 1], [], []>} : vector<8x32xbf16>, vector<32x96xbf16>, vector<8x96xf32> -> vector<8x96xf32>
    %c0_15 = arith.constant 0 : index
    %c0_16 = arith.constant 0 : index
    %37 = vector.load %arg4[%c0_15, %c0_16] : memref<8x8xf32, #tpu.memory_space<vmem>>, vector<8x8xf32>
    %c0_17 = arith.constant 0 : index
    %c0_18 = arith.constant 0 : index
    %38 = vector.load %arg5[%c0_17, %c0_18] : memref<8x8xf32, #tpu.memory_space<vmem>>, vector<8x8xf32>
    %39 = vector.extract_strided_slice %36 {offsets = [0, 0], sizes = [8, 32], strides = [1, 1]} : vector<8x96xf32> to vector<8x32xf32>
    %40 = vector.shape_cast %39 : vector<8x32xf32> to vector<8x4x8xf32>
    %41 = vector.extract_strided_slice %40 {offsets = [0, 0, 4], sizes = [8, 4, 4], strides = [1, 1, 1]} : vector<8x4x8xf32> to vector<8x4x4xf32>
    %cst_19 = arith.constant 0.000000e+00 : f32
    %42 = vector.broadcast %cst_19 : f32 to vector<8x4x4xf32>
    %43 = arith.subf %42, %41 : vector<8x4x4xf32>
    %44 = vector.extract_strided_slice %40 {offsets = [0, 0, 0], sizes = [8, 4, 4], strides = [1, 1, 1]} : vector<8x4x8xf32> to vector<8x4x4xf32>
    %45 = tpu.concatenate %43, %44 in 2 : vector<8x4x4xf32>, vector<8x4x4xf32> -> vector<8x4x8xf32>
    %46 = vector.shape_cast %37 : vector<8x8xf32> to vector<8x1x8xf32>
    %47 = vector.broadcast %46 : vector<8x1x8xf32> to vector<8x4x8xf32>
    %48 = arith.mulf %40, %47 : vector<8x4x8xf32>
    %49 = vector.shape_cast %38 : vector<8x8xf32> to vector<8x1x8xf32>
    %50 = vector.broadcast %49 : vector<8x1x8xf32> to vector<8x4x8xf32>
    %51 = arith.mulf %45, %50 : vector<8x4x8xf32>
    %52 = arith.addf %48, %51 : vector<8x4x8xf32>
    %53 = vector.shape_cast %52 : vector<8x4x8xf32> to vector<8x32xf32>
    %54 = arith.truncf %53 : vector<8x32xf32> to vector<8x32xbf16>
    %c0_20 = arith.constant 0 : index
    %c0_21 = arith.constant 0 : index
    %c0_22 = arith.constant 0 : index
    %55 = vector.load %arg8[%c0_20, %c0_21, %c0_22] : memref<1x8x32xbf16, #tpu.memory_space<vmem>>, vector<1x8x32xbf16>
    %56 = vector.shape_cast %55 : vector<1x8x32xbf16> to vector<8x32xbf16>
    %57 = vector.shape_cast %54 : vector<8x32xbf16> to vector<1x8x32xbf16>
    tpu.vector_store %arg8[%c0_20, %c0_21, %c0_22], %57 {strides = array<i32>} : memref<1x8x32xbf16, #tpu.memory_space<vmem>>, vector<1x8x32xbf16>,
    %58 = vector.extract_strided_slice %36 {offsets = [0, 32], sizes = [8, 32], strides = [1, 1]} : vector<8x96xf32> to vector<8x32xf32>
    %59 = vector.shape_cast %58 : vector<8x32xf32> to vector<8x4x8xf32>
    %60 = vector.extract_strided_slice %59 {offsets = [0, 0, 4], sizes = [8, 4, 4], strides = [1, 1, 1]} : vector<8x4x8xf32> to vector<8x4x4xf32>
    %cst_23 = arith.constant 0.000000e+00 : f32
    %61 = vector.broadcast %cst_23 : f32 to vector<8x4x4xf32>
    %62 = arith.subf %61, %60 : vector<8x4x4xf32>
    %63 = vector.extract_strided_slice %59 {offsets = [0, 0, 0], sizes = [8, 4, 4], strides = [1, 1, 1]} : vector<8x4x8xf32> to vector<8x4x4xf32>
    %64 = tpu.concatenate %62, %63 in 2 : vector<8x4x4xf32>, vector<8x4x4xf32> -> vector<8x4x8xf32>
    %65 = vector.shape_cast %37 : vector<8x8xf32> to vector<8x1x8xf32>
    %66 = vector.broadcast %65 : vector<8x1x8xf32> to vector<8x4x8xf32>
    %67 = arith.mulf %59, %66 : vector<8x4x8xf32>
    %68 = vector.shape_cast %38 : vector<8x8xf32> to vector<8x1x8xf32>
    %69 = vector.broadcast %68 : vector<8x1x8xf32> to vector<8x4x8xf32>
    %70 = arith.mulf %64, %69 : vector<8x4x8xf32>
    %71 = arith.addf %67, %70 : vector<8x4x8xf32>
    %72 = vector.shape_cast %71 : vector<8x4x8xf32> to vector<8x32xf32>
    %73 = arith.truncf %72 : vector<8x32xf32> to vector<8x32xbf16>
    %c0_24 = arith.constant 0 : index
    %c0_25 = arith.constant 0 : index
    %c0_26 = arith.constant 0 : index
    %74 = vector.load %arg9[%c0_24, %c0_25, %c0_26] : memref<1x8x32xbf16, #tpu.memory_space<vmem>>, vector<1x8x32xbf16>
    %75 = vector.shape_cast %74 : vector<1x8x32xbf16> to vector<8x32xbf16>
    %76 = vector.shape_cast %73 : vector<8x32xbf16> to vector<1x8x32xbf16>
    tpu.vector_store %arg9[%c0_24, %c0_25, %c0_26], %76 {strides = array<i32>} : memref<1x8x32xbf16, #tpu.memory_space<vmem>>, vector<1x8x32xbf16>,
    %77 = vector.extract_strided_slice %36 {offsets = [0, 64], sizes = [8, 32], strides = [1, 1]} : vector<8x96xf32> to vector<8x32xf32>
    %78 = arith.truncf %77 : vector<8x32xf32> to vector<8x32xbf16>
    %c0_27 = arith.constant 0 : index
    %c0_28 = arith.constant 0 : index
    %c0_29 = arith.constant 0 : index
    %79 = vector.load %arg10[%c0_27, %c0_28, %c0_29] : memref<1x8x32xbf16, #tpu.memory_space<vmem>>, vector<1x8x32xbf16>
    %80 = vector.shape_cast %79 : vector<1x8x32xbf16> to vector<8x32xbf16>
    %81 = vector.shape_cast %78 : vector<8x32xbf16> to vector<1x8x32xbf16>
    tpu.vector_store %arg10[%c0_27, %c0_28, %c0_29], %81 {strides = array<i32>} : memref<1x8x32xbf16, #tpu.memory_space<vmem>>, vector<1x8x32xbf16>,
    return
  }
  func.func @transform_0(%arg0: i32, %arg1: i32) -> (i32, i32, i32) {
    %c0_i32 = arith.constant 0 : i32
    %c0_i32_0 = arith.constant 0 : i32
    %c0_i32_1 = arith.constant 0 : i32
    return %arg0, %c0_i32, %c0_i32_0 : i32, i32, i32
  }
  func.func @transform_1(%arg0: i32, %arg1: i32) -> (i32, i32, i32) {
    %c0_i32 = arith.constant 0 : i32
    %c0_i32_0 = arith.constant 0 : i32
    return %arg0, %arg1, %c0_i32 : i32, i32, i32
  }
  func.func @transform_2(%arg0: i32, %arg1: i32) -> (i32, i32) {
    %c0_i32 = arith.constant 0 : i32
    %c0_i32_0 = arith.constant 0 : i32
    return %arg1, %c0_i32 : i32, i32
  }
  func.func @transform_3(%arg0: i32, %arg1: i32) -> (i32, i32) {
    %c0_i32 = arith.constant 0 : i32
    %c0_i32_0 = arith.constant 0 : i32
    return %arg1, %c0_i32 : i32, i32
  }
  func.func @transform_4(%arg0: i32, %arg1: i32) -> (i32, i32) {
    %c0_i32 = arith.constant 0 : i32
    %c0_i32_0 = arith.constant 0 : i32
    %c0_i32_1 = arith.constant 0 : i32
    return %c0_i32, %c0_i32_0 : i32, i32
  }
  func.func @transform_5(%arg0: i32, %arg1: i32) -> (i32, i32) {
    %c0_i32 = arith.constant 0 : i32
    %c0_i32_0 = arith.constant 0 : i32
    %c0_i32_1 = arith.constant 0 : i32
    return %c0_i32, %c0_i32_0 : i32, i32
  }
  func.func @transform_6(%arg0: i32, %arg1: i32) -> (i32, i32, i32) {
    %c0_i32 = arith.constant 0 : i32
    %c0_i32_0 = arith.constant 0 : i32
    return %arg0, %arg1, %c0_i32 : i32, i32, i32
  }
  func.func @transform_7(%arg0: i32, %arg1: i32) -> (i32, i32, i32) {
    %c0_i32 = arith.constant 0 : i32
    %c0_i32_0 = arith.constant 0 : i32
    return %arg0, %arg1, %c0_i32 : i32, i32, i32
  }
  func.func @transform_8(%arg0: i32, %arg1: i32) -> (i32, i32, i32) {
    %c0_i32 = arith.constant 0 : i32
    %c0_i32_0 = arith.constant 0 : i32
    return %arg0, %arg1, %c0_i32 : i32, i32, i32
  }
}

</mosaic_0001>

<llo_original>
// kernel: tpu_custom_call.1
$region0: #{tpu_custom_call.1}
  #allocation0 [shape = 'u32[]', space=smem, size = 0x4, offset = 0x4, fixed_abs, tag = 'smem constant byte address 0x4 - core index']
  #allocation1 [shape = 'u32[144,128]{1,0:T(1,128)}', space=vmem, size = 0x12000, scoped, tag = 'internal scratch']
  %s0 = inlined_call_operand.vmem [shape: f32[2,6,32], index: 0, kind: input, shape index: {}]
  %s1 = inlined_call_operand.vmem [shape: f32[2,16,32], index: 1, kind: input, shape index: {}]
  %s2 = inlined_call_operand.vmem [shape: f32[16,8], index: 2, kind: input, shape index: {}]
  %s3 = inlined_call_operand.vmem [shape: f32[16,8], index: 3, kind: input, shape index: {}]
  %s4 = inlined_call_operand.vmem [shape: f32[1,32], index: 4, kind: input, shape index: {}]
  %s5 = inlined_call_operand.vmem [shape: bf16[32,96], index: 5, kind: input, shape index: {}]
  %s6 = inlined_call_operand.hbm [shape: bf16[2,16,32], index: 6, kind: output, shape index: {0}]
  %s7 = inlined_call_operand.hbm [shape: bf16[2,16,32], index: 7, kind: output, shape index: {1}]
  %s8 = inlined_call_operand.hbm [shape: bf16[2,16,32], index: 8, kind: output, shape index: {2}]
  %9 = xla_tuple %s6, %s7, %s8
  %s10 = sld [smem:[#allocation0]]
  $region73: #{tpu_custom_call.1} parent=0
    _
  %s12 = ssub.s32 1, %s10
  %s13 = scalar_select 0, %s12, %s10
  $region1: #{tpu_custom_call.1} parent=0
    #allocation2 [shape = 'u8[4096]{0}', space=vmem, size = 0x1000, scoped, tag = 'output window, operand 0']
    #allocation3 [shape = 's32[2]{0}', space=sflag, size = 0x8, scoped, tag = 'scoped memory for tpu_custom_call.1']
    #allocation4 [shape = 'u8[4096]{0}', space=vmem, size = 0x1000, scoped, tag = 'output window, operand 1']
    #allocation5 [shape = 's32[2]{0}', space=sflag, size = 0x8, scoped, tag = 'scoped memory for tpu_custom_call.1']
    #allocation6 [shape = 'u8[4096]{0}', space=vmem, size = 0x1000, scoped, tag = 'output window, operand 2']
    %14 = vsyncpa [#allocation3], 0
    %s15 = scalar_lea.sflag [#allocation3], 1
    %16 = vsyncpa %s15, 0
    %17 = vsyncpa [#allocation5], 0
    %s18 = scalar_lea.sflag [#allocation5], 1
    %19 = vsyncpa %s18, 0
    loop: start=0, step=1, limit=6
    $region2: #{tpu_custom_call.1} parent=1 // loop_pre_header
      _
    $region3: #{tpu_custom_call.1} parent=1 // loop_header
      %s21 = sphi 0, %s25
      %p22 = scmp.ge.s32.totalorder %s21, 6
      %s28 = sphi 0, %s40
      %s29 = sphi 0, %s36
      %s30 = sphi 0, %s28
      %s31 = sphi 0, %s29
      %s32 = sphi 0, %s30
      %s33 = sphi 0, %s31
      %s43 = sphi 0, %s45
      %s46 = sphi 0, %s43
      %s47 = sphi 0, %s46
      %s63 = sphi 0, %s47
      %s71 = sphi 0, %s73
      %s74 = sphi 0, %s71
      %s75 = sphi 0, %s74
      %s91 = sphi 0, %s75
      %s97 = sphi 0, %s99
      %s100 = sphi 0, %s97
      %s101 = sphi 0, %s100
      %s117 = sphi 0, %s101
      %s123 = sphi 0, %s125
      %s126 = sphi 0, %s123
      %s127 = sphi 0, %s126
      %s143 = sphi 0, %s127
      %s147 = sphi 0, %s147
      %s149 = sphi 0, %s147
      %s150 = sphi 0, %s149
      %s164 = sphi 0, %s150
      %s168 = sphi 0, %s168
      %s170 = sphi 0, %s168
      %s171 = sphi 0, %s170
      %s185 = sphi 0, %s171
      %s193 = sphi 0, %s195
      %s196 = sphi 0, %s193
      %s197 = sphi 0, %s196
      %s213 = sphi 0, %s197
      %s221 = sphi 0, %s223
      %s224 = sphi 0, %s221
      %s225 = sphi 0, %s224
      %s241 = sphi 0, %s225
      %s249 = sphi 0, %s251
      %s252 = sphi 0, %s249
      %s253 = sphi 0, %s252
      %s269 = sphi 0, %s253
    $region4: #{tpu_custom_call.1} parent=1 // loop_header_branch
      %24 = sbr.rel (%p22) target = $region8
    $region5: #{tpu_custom_call.1} parent=1 // loop_body
      %s26 = ssub.s32 %s21, 1
      %s27 = ssub.s32 %s21, 2
      %s34 = sadd.s32 1, %s29
      %p35 = scmp.ge.s32.totalorder %s34, 2
      %s36 = scalar_select %p35, 0, %s34
      %s37 = sadd.s32 1, %s28
      %s38 = scalar_select %p35, %s37, %s28
      %p39 = scmp.ge.s32.totalorder %s38, 2
      %s40 = scalar_select %p39, 0, %s38
      %s41 = ssub.s32 %s28, %s40
      %p42 = scmp.eq.s32.totalorder %s41, 0
      %s44 = sadd.s32 %s43, 1
      %s45 = scalar_select %p42, %s43, %s44
      %p48 = pneg %p42
      %p49 = scmp.eq.s32.totalorder %s21, 3
      %p50 = por %p48, %p49
      %p51 = scmp.ne.s32.totalorder %s43, %s46
      %p52 = scmp.eq.s32.totalorder %s21, 0
      %p53 = por %p51, %p52
      %p54 = scmp.ne.s32.totalorder %s43, %s46
      %p55 = scmp.eq.s32.totalorder %s26, 3
      %p56 = por %p54, %p55
      %p57 = scmp.ne.s32.totalorder %s46, %s47
      %p58 = scmp.eq.s32.totalorder %s26, 0
      %p59 = por %p57, %p58
      %p60 = scmp.ne.s32.totalorder %s46, %s47
      %p61 = scmp.eq.s32.totalorder %s27, 3
      %p62 = por %p60, %p61
      %p64 = scmp.ne.s32.totalorder %s47, %s63
      %p65 = scmp.eq.s32.totalorder %s27, 0
      %p66 = por %p64, %p65
      %s67 = ssub.s32 %s28, %s40
      %s68 = ssub.s32 %s29, %s36
      %s69 = sor.u32 %s67, %s68
      %p70 = scmp.eq.s32.totalorder %s69, 0
      %s72 = sadd.s32 %s71, 1
      %s73 = scalar_select %p70, %s71, %s72
      %p76 = pneg %p70
      %p77 = scmp.eq.s32.totalorder %s21, 3
      %p78 = por %p76, %p77
      %p79 = scmp.ne.s32.totalorder %s71, %s74
      %p80 = scmp.eq.s32.totalorder %s21, 0
      %p81 = por %p79, %p80
      %p82 = scmp.ne.s32.totalorder %s71, %s74
      %p83 = scmp.eq.s32.totalorder %s26, 3
      %p84 = por %p82, %p83
      %p85 = scmp.ne.s32.totalorder %s74, %s75
      %p86 = scmp.eq.s32.totalorder %s26, 0
      %p87 = por %p85, %p86
      %p88 = scmp.ne.s32.totalorder %s74, %s75
      %p89 = scmp.eq.s32.totalorder %s27, 3
      %p90 = por %p88, %p89
      %p92 = scmp.ne.s32.totalorder %s75, %s91
      %p93 = scmp.eq.s32.totalorder %s27, 0
      %p94 = por %p92, %p93
      %s95 = ssub.s32 %s29, %s36
      %p96 = scmp.eq.s32.totalorder %s95, 0
      %s98 = sadd.s32 %s97, 1
      %s99 = scalar_select %p96, %s97, %s98
      %p102 = pneg %p96
      %p103 = scmp.eq.s32.totalorder %s21, 3
      %p104 = por %p102, %p103
      %p105 = scmp.ne.s32.totalorder %s97, %s100
      %p106 = scmp.eq.s32.totalorder %s21, 0
      %p107 = por %p105, %p106
      %p108 = scmp.ne.s32.totalorder %s97, %s100
      %p109 = scmp.eq.s32.totalorder %s26, 3
      %p110 = por %p108, %p109
      %p111 = scmp.ne.s32.totalorder %s100, %s101
      %p112 = scmp.eq.s32.totalorder %s26, 0
      %p113 = por %p111, %p112
      %p114 = scmp.ne.s32.totalorder %s100, %s101
      %p115 = scmp.eq.s32.totalorder %s27, 3
      %p116 = por %p114, %p115
      %p118 = scmp.ne.s32.totalorder %s101, %s117
      %p119 = scmp.eq.s32.totalorder %s27, 0
      %p120 = por %p118, %p119
      %s121 = ssub.s32 %s29, %s36
      %p122 = scmp.eq.s32.totalorder %s121, 0
      %s124 = sadd.s32 %s123, 1
      %s125 = scalar_select %p122, %s123, %s124
      %p128 = pneg %p122
      %p129 = scmp.eq.s32.totalorder %s21, 3
      %p130 = por %p128, %p129
      %p131 = scmp.ne.s32.totalorder %s123, %s126
      %p132 = scmp.eq.s32.totalorder %s21, 0
      %p133 = por %p131, %p132
      %p134 = scmp.ne.s32.totalorder %s123, %s126
      %p135 = scmp.eq.s32.totalorder %s26, 3
      %p136 = por %p134, %p135
      %p137 = scmp.ne.s32.totalorder %s126, %s127
      %p138 = scmp.eq.s32.totalorder %s26, 0
      %p139 = por %p137, %p138
      %p140 = scmp.ne.s32.totalorder %s126, %s127
      %p141 = scmp.eq.s32.totalorder %s27, 3
      %p142 = por %p140, %p141
      %p144 = scmp.ne.s32.totalorder %s127, %s143
      %p145 = scmp.eq.s32.totalorder %s27, 0
      %p146 = por %p144, %p145
      %s148 = sadd.s32 %s147, 1
      %p151 = scmp.eq.s32.totalorder %s21, 3
      %p152 = scmp.ne.s32.totalorder %s147, %s149
      %p153 = scmp.eq.s32.totalorder %s21, 0
      %p154 = por %p152, %p153
      %p155 = scmp.ne.s32.totalorder %s147, %s149
      %p156 = scmp.eq.s32.totalorder %s26, 3
      %p157 = por %p155, %p156
      %p158 = scmp.ne.s32.totalorder %s149, %s150
      %p159 = scmp.eq.s32.totalorder %s26, 0
      %p160 = por %p158, %p159
      %p161 = scmp.ne.s32.totalorder %s149, %s150
      %p162 = scmp.eq.s32.totalorder %s27, 3
      %p163 = por %p161, %p162
      %p165 = scmp.ne.s32.totalorder %s150, %s164
      %p166 = scmp.eq.s32.totalorder %s27, 0
      %p167 = por %p165, %p166
      %s169 = sadd.s32 %s168, 1
      %p172 = scmp.eq.s32.totalorder %s21, 3
      %p173 = scmp.ne.s32.totalorder %s168, %s170
      %p174 = scmp.eq.s32.totalorder %s21, 0
      %p175 = por %p173, %p174
      %p176 = scmp.ne.s32.totalorder %s168, %s170
      %p177 = scmp.eq.s32.totalorder %s26, 3
      %p178 = por %p176, %p177
      %p179 = scmp.ne.s32.totalorder %s170, %s171
      %p180 = scmp.eq.s32.totalorder %s26, 0
      %p181 = por %p179, %p180
      %p182 = scmp.ne.s32.totalorder %s170, %s171
      %p183 = scmp.eq.s32.totalorder %s27, 3
      %p184 = por %p182, %p183
      %p186 = scmp.ne.s32.totalorder %s171, %s185
      %p187 = scmp.eq.s32.totalorder %s27, 0
      %p188 = por %p186, %p187
      %s189 = ssub.s32 %s28, %s40
      %s190 = ssub.s32 %s29, %s36
      %s191 = sor.u32 %s189, %s190
      %p192 = scmp.eq.s32.totalorder %s191, 0
      %s194 = sadd.s32 %s193, 1
      %s195 = scalar_select %p192, %s193, %s194
      %p198 = pneg %p192
      %p199 = scmp.eq.s32.totalorder %s21, 3
      %p200 = por %p198, %p199
      %p201 = scmp.ne.s32.totalorder %s193, %s196
      %p202 = scmp.eq.s32.totalorder %s21, 0
      %p203 = por %p201, %p202
      %p204 = scmp.ne.s32.totalorder %s193, %s196
      %p205 = scmp.eq.s32.totalorder %s26, 3
      %p206 = por %p204, %p205
      %p207 = scmp.ne.s32.totalorder %s196, %s197
      %p208 = scmp.eq.s32.totalorder %s26, 0
      %p209 = por %p207, %p208
      %p210 = scmp.ne.s32.totalorder %s196, %s197
      %p211 = scmp.eq.s32.totalorder %s27, 3
      %p212 = por %p210, %p211
      %p214 = scmp.ne.s32.totalorder %s197, %s213
      %p215 = scmp.eq.s32.totalorder %s27, 0
      %p216 = por %p214, %p215
      %s217 = ssub.s32 %s28, %s40
      %s218 = ssub.s32 %s29, %s36
      %s219 = sor.u32 %s217, %s218
      %p220 = scmp.eq.s32.totalorder %s219, 0
      %s222 = sadd.s32 %s221, 1
      %s223 = scalar_select %p220, %s221, %s222
      %p226 = pneg %p220
      %p227 = scmp.eq.s32.totalorder %s21, 3
      %p228 = por %p226, %p227
      %p229 = scmp.ne.s32.totalorder %s221, %s224
      %p230 = scmp.eq.s32.totalorder %s21, 0
      %p231 = por %p229, %p230
      %p232 = scmp.ne.s32.totalorder %s221, %s224
      %p233 = scmp.eq.s32.totalorder %s26, 3
      %p234 = por %p232, %p233
      %p235 = scmp.ne.s32.totalorder %s224, %s225
      %p236 = scmp.eq.s32.totalorder %s26, 0
      %p237 = por %p235, %p236
      %p238 = scmp.ne.s32.totalorder %s224, %s225
      %p239 = scmp.eq.s32.totalorder %s27, 3
      %p240 = por %p238, %p239
      %p242 = scmp.ne.s32.totalorder %s225, %s241
      %p243 = scmp.eq.s32.totalorder %s27, 0
      %p244 = por %p242, %p243
      %s245 = ssub.s32 %s28, %s40
      %s246 = ssub.s32 %s29, %s36
      %s247 = sor.u32 %s245, %s246
      %p248 = scmp.eq.s32.totalorder %s247, 0
      %s250 = sadd.s32 %s249, 1
      %s251 = scalar_select %p248, %s249, %s250
      %p254 = pneg %p248
      %p255 = scmp.eq.s32.totalorder %s21, 3
      %p256 = por %p254, %p255
      %p257 = scmp.ne.s32.totalorder %s249, %s252
      %p258 = scmp.eq.s32.totalorder %s21, 0
      %p259 = por %p257, %p258
      %p260 = scmp.ne.s32.totalorder %s249, %s252
      %p261 = scmp.eq.s32.totalorder %s26, 3
      %p262 = por %p260, %p261
      %p263 = scmp.ne.s32.totalorder %s252, %s253
      %p264 = scmp.eq.s32.totalorder %s26, 0
      %p265 = por %p263, %p264
      %p266 = scmp.ne.s32.totalorder %s252, %s253
      %p267 = scmp.eq.s32.totalorder %s27, 3
      %p268 = por %p266, %p267
      %p270 = scmp.ne.s32.totalorder %s253, %s269
      %p271 = scmp.eq.s32.totalorder %s27, 0
      %p272 = por %p270, %p271
      %p273 = scmp.le.s32.totalorder 1, %s21
      %p274 = scmp.lt.s32.totalorder %s21, 5
      %p275 = pnand %p273, %p274
      %p276 = pneg %p275
      // Predicated region
      $region9: #{tpu_custom_call.1} parent=5 // pred_check
        _
      $region10: #{tpu_custom_call.1} parent=5 // pred_check_branch
        %278 = sbr.rel (%p275) target = $region12
      $region11: #{tpu_custom_call.1} parent=5 // pred_region
        %s279 = ssub.s32 %s21, 1
        // Predicated region
        $region13: #{tpu_custom_call.1} parent=11 // pred_check
          %p280 = pneg %p160
        $region14: #{tpu_custom_call.1} parent=11 // pred_check_branch
          %282 = sbr.rel (%p280) target = $region16
        $region15: #{tpu_custom_call.1} parent=11 // pred_region
          _
        $region16: #{tpu_custom_call.1} parent=11 // pred_fallthru
          _
        // Predicated region
        $region17: #{tpu_custom_call.1} parent=11 // pred_check
          %p283 = pneg %p181
        $region18: #{tpu_custom_call.1} parent=11 // pred_check_branch
          %285 = sbr.rel (%p283) target = $region20
        $region19: #{tpu_custom_call.1} parent=11 // pred_region
          _
        $region20: #{tpu_custom_call.1} parent=11 // pred_fallthru
          _
      $region12: #{tpu_custom_call.1} parent=5 // pred_fallthru
        _
      %p286 = scmp.lt.s32.totalorder %s21, 4
      // Predicated region
      $region21: #{tpu_custom_call.1} parent=5 // pred_check
        %p287 = pneg %p286
      $region22: #{tpu_custom_call.1} parent=5 // pred_check_branch
        %289 = sbr.rel (%p287) target = $region24
      $region23: #{tpu_custom_call.1} parent=5 // pred_region
        // Predicated region
        $region25: #{tpu_custom_call.1} parent=23 // pred_check
          %p290 = pneg %p53
        $region26: #{tpu_custom_call.1} parent=23 // pred_check_branch
          %292 = sbr.rel (%p290) target = $region28
        $region27: #{tpu_custom_call.1} parent=23 // pred_region
          %p293 = scmp.lt.s32.totalorder %s28, 1
          %s294 = scalar_select %p293, %s28, 1
          %s295 = smul.addr %s294, 8
          %s296 = scalar_lea.vmem %s0, %s295
        $region28: #{tpu_custom_call.1} parent=23 // pred_fallthru
          _
        // Predicated region
        $region29: #{tpu_custom_call.1} parent=23 // pred_check
          %p297 = pneg %p81
        $region30: #{tpu_custom_call.1} parent=23 // pred_check_branch
          %299 = sbr.rel (%p297) target = $region32
        $region31: #{tpu_custom_call.1} parent=23 // pred_region
          %p300 = scmp.lt.s32.totalorder %s28, 1
          %s301 = scalar_select %p300, %s28, 1
          %p302 = scmp.lt.s32.totalorder %s29, 1
          %s303 = scalar_select %p302, %s29, 1
          %s304 = smul.addr %s301, 2
          %s305 = sadd.s32 %s303, %s304
          %s306 = smul.addr %s305, 8
          %s307 = scalar_lea.vmem %s1, %s306
        $region32: #{tpu_custom_call.1} parent=23 // pred_fallthru
          _
        // Predicated region
        $region33: #{tpu_custom_call.1} parent=23 // pred_check
          %p308 = pneg %p107
        $region34: #{tpu_custom_call.1} parent=23 // pred_check_branch
          %310 = sbr.rel (%p308) target = $region36
        $region35: #{tpu_custom_call.1} parent=23 // pred_region
          %p311 = scmp.lt.s32.totalorder %s29, 1
          %s312 = scalar_select %p311, %s29, 1
          %s313 = smul.addr %s312, 8
          %s314 = scalar_lea.vmem %s2, %s313
        $region36: #{tpu_custom_call.1} parent=23 // pred_fallthru
          _
        // Predicated region
        $region37: #{tpu_custom_call.1} parent=23 // pred_check
          %p315 = pneg %p133
        $region38: #{tpu_custom_call.1} parent=23 // pred_check_branch
          %317 = sbr.rel (%p315) target = $region40
        $region39: #{tpu_custom_call.1} parent=23 // pred_region
          %p318 = scmp.lt.s32.totalorder %s29, 1
          %s319 = scalar_select %p318, %s29, 1
          %s320 = smul.addr %s319, 8
          %s321 = scalar_lea.vmem %s3, %s320
        $region40: #{tpu_custom_call.1} parent=23 // pred_fallthru
          _
      $region24: #{tpu_custom_call.1} parent=5 // pred_fallthru
        _
      %p322 = scmp.le.s32.totalorder 1, %s21
      %p323 = scmp.lt.s32.totalorder %s21, 5
      %p324 = pnand %p322, %p323
      %p325 = pneg %p324
      // Predicated region
      $region41: #{tpu_custom_call.1} parent=5 // pred_check
        _
      $region42: #{tpu_custom_call.1} parent=5 // pred_check_branch
        %327 = sbr.rel (%p324) target = $region44
      $region43: #{tpu_custom_call.1} parent=5 // pred_region
        %s328 = ssub.s32 %s21, 1
        %p329 = scmp.lt.s32.totalorder %s30, 1
        %s330 = scalar_select %p329, %s30, 1
        %s331 = smul.addr %s330, 8
        %s332 = scalar_lea.vmem %s0, %s331
        %p333 = pneg %p59
        %p334 = pneg %p56
        %p335 = scmp.lt.s32.totalorder %s30, 1
        %s336 = scalar_select %p335, %s30, 1
        %p337 = scmp.lt.s32.totalorder %s31, 1
        %s338 = scalar_select %p337, %s31, 1
        %s339 = smul.addr %s336, 2
        %s340 = sadd.s32 %s338, %s339
        %s341 = smul.addr %s340, 8
        %s342 = scalar_lea.vmem %s1, %s341
        %p343 = pneg %p87
        %p344 = pneg %p84
        %p345 = scmp.lt.s32.totalorder %s31, 1
        %s346 = scalar_select %p345, %s31, 1
        %s347 = smul.addr %s346, 8
        %s348 = scalar_lea.vmem %s2, %s347
        %p349 = pneg %p113
        %p350 = pneg %p110
        %p351 = scmp.lt.s32.totalorder %s31, 1
        %s352 = scalar_select %p351, %s31, 1
        %s353 = smul.addr %s352, 8
        %s354 = scalar_lea.vmem %s3, %s353
        %p355 = pneg %p139
        %p356 = pneg %p136
        %p357 = pneg %p160
        %p358 = pneg %p157
        %p359 = pneg %p181
        %p360 = pneg %p178
        %p361 = pneg %p209
        %p362 = pneg %p206
        %s363 = sand.u32 %s196, 1
        %s364 = scalar_lea.sflag [#allocation3], %s363
        %s365 = sand.u32 %s196, 1
        %s366 = smul.addr %s365, 4
        %s367 = scalar_lea.vmem [#allocation2], %s366
        %p368 = pneg %p237
        %p369 = pneg %p234
        %s370 = sand.u32 %s26, 1
        %s371 = scalar_lea.sflag [#allocation5], %s370
        %s372 = sand.u32 %s224, 1
        %s373 = smul.addr %s372, 4
        %s374 = scalar_lea.vmem [#allocation4], %s373
        %p375 = pneg %p265
        %p376 = pneg %p262
        %s377 = sand.u32 %s26, 1
        %s378 = scalar_lea.sflag [#allocation5], %s377
        %s379 = sand.u32 %s252, 1
        %s380 = smul.addr %s379, 4
        %s381 = scalar_lea.vmem [#allocation6], %s380
        %p382 = scmp.lt.s32.totalorder %s30, 1
        %s383 = scalar_select %p382, %s30, 1
        %s384 = smul.addr %s383, 8
        %s385 = scalar_lea.vmem %s0, %s384
        %p386 = scmp.lt.s32.totalorder %s30, 1
        %s387 = scalar_select %p386, %s30, 1
        %p388 = scmp.lt.s32.totalorder %s31, 1
        %s389 = scalar_select %p388, %s31, 1
        %s390 = smul.addr %s387, 2
        %s391 = sadd.s32 %s389, %s390
        %s392 = smul.addr %s391, 8
        %s393 = scalar_lea.vmem %s1, %s392
        %p394 = scmp.lt.s32.totalorder %s31, 1
        %s395 = scalar_select %p394, %s31, 1
        %s396 = smul.addr %s395, 8
        %s397 = scalar_lea.vmem %s2, %s396
        %p398 = scmp.lt.s32.totalorder %s31, 1
        %s399 = scalar_select %p398, %s31, 1
        %s400 = smul.addr %s399, 8
        %s401 = scalar_lea.vmem %s3, %s400
        %v403 = vld [vmem:[%s385] sm:$0x3f]
        %v404 = vld [vmem:[%s393] sm:$0xff]
        %vm405 = vcmask 261120
        %v406 = vsel %vm405, %v404, 0.0
        %407 = vadd.xlane.f32.xlu0 %v406
        %v408 = vpop.xlane.xlu0 %407
        %v409 = vrcp.pop 32.0
        %v410 = vmul.f32 %v408, %v409
        %v411 = vsub.f32 %v404, %v410
        %v412 = vmul.f32 %v411, %v411
        %v413 = vsel %vm405, %v412, 0.0
        %414 = vadd.xlane.f32.xlu0 %v413
        %v415 = vpop.xlane.xlu0 %414
        %v416 = vmul.f32 %v415, %v409
        %v417 = vadd.f32 %v416, 1e-05
        %v418 = vrsqrt.pop %v417
        %v419 = vmul.f32 %v411, %v418
        %v420 = vld [vmem:[%s4] sm:$0x1]
        %v421 = vadd.f32 %v403, 1.0
        %v424 = vunpack.c.l.s4 1966171168
        %v425 = vunpack.c.0.s8 %v424
        %v426 = vlaneseq
        %v427 = vshrl.u32 %v426, 7
        %v428 = vsub.s32 %v425, %v427
        %v429 = vrot.slane %v421, %v428
        %v430 = vcombine.high %v429, %v429
        %v432 = vunpack.c.l.s4 1966171168
        %v433 = vunpack.c.0.s8 %v432
        %v434 = vlaneseq
        %v435 = vshrl.u32 %v434, 7
        %v436 = vsub.s32 %v433, %v435
        %v437 = vrot.slane %v430, %v436
        %v439 = vmul.f32 %v420, %v437
        %v441 = vlaneseq
        %v442 = vshrl.u32 %v441, 7
        %v443 = vsub.s32 0, %v442
        %v444 = vrot.slane %v439, %v443
        %v446 = vmul.f32 %v419, %v444
        %v447 = vlaneseq
        %v448 = vshrl.u32 %v447, 7
        %v449 = vsub.s32 0, %v448
        %v450 = vrot.slane %v403, %v449
        %v451 = vadd.f32 %v446, %v450
        %v452 = vpack.c.bf16 %v451, %v451
        %v453 = vld [vmem:[%s5] sm:$0xf]
        %v454 = vld [vmem:[%s5 + $0x4] sm:$0xf]
        %v455 = vld [vmem:[%s5 + $0x8] sm:$0xf]
        %v456 = vld [vmem:[%s5 + $0xc] sm:$0xf]
        %v461 = vunpack.c.l.b16 %v453
        %v462 = vunpack.c.l.b16 %v454
        %v463 = vunpack.c.l.b16 %v455
        %v464 = vunpack.c.l.b16 %v456
        %v465 = vpack.c.b16 %v462, %v461
        %v466 = vpack.c.b16 %v464, %v463
        %v470 = vsel %vm405, %v452, 0
        %472 = vmatprep.subr.bf16.mxu0 0
        %473 = vmatpush1.bf16.msra.mxu0 0
        %474 = vmatprep.subr.bf16.mxu0 0
        %475 = vmatpush1.bf16.msra.mxu0 0
        %476 = vmatprep.subr.bf16.mxu0 0
        %477 = vmatpush1.bf16.msra.mxu0 0
        %478 = vmatprep.subr.bf16.mxu0 0
        %479 = vmatpush1.bf16.msra.mxu0 0
        %480 = vmatprep.subr.bf16.mxu0 0
        %481 = vmatpush1.bf16.msra.mxu0 0
        %482 = vmatprep.subr.bf16.mxu0 0
        %483 = vmatpush1.bf16.msra.mxu0 0
        %484 = vmatprep.subr.bf16.mxu0 0
        %485 = vmatpush1.bf16.msra.mxu0 %v466
        %486 = vmatprep.subr.bf16.mxu0 0
        %487 = vmatpush1.bf16.msra.mxu0 %v465
        %488 = vmatprep.subr.bf16.mxu0 0
        %489 = vmatpush2.bf16.msra.mxu0 0
        %490 = vmatprep.subr.bf16.mxu0 0
        %491 = vmatpush2.bf16.msra.mxu0 0
        %492 = vmatprep.subr.bf16.mxu0 0
        %493 = vmatpush2.bf16.msra.mxu0 0
        %494 = vmatprep.subr.bf16.mxu0 0
        %495 = vmatpush2.bf16.msra.mxu0 0
        %496 = vmatprep.subr.bf16.mxu0 0
        %497 = vmatpush2.bf16.msra.mxu0 0
        %498 = vmatprep.subr.bf16.mxu0 0
        %499 = vmatpush2.bf16.msra.mxu0 0
        %500 = vmatprep.subr.bf16.mxu0 0
        %501 = vmatpush2.bf16.msra.mxu0 0
        %502 = vmatprep.subr.bf16.mxu0 0
        %503 = vmatpush2.bf16.msra.mxu0 0
        %504 = vmatprep.mubr.bf16.mxu0 0
        %505 = vmatmul.mubr.bf16.gmra.mxu0 %v470
        %v506 = vpop.f32.mrf.mxu0
        %v507 = vadd.f32 0.0, %v506
        %v508 = vpop.f32.mrf.mxu0
        %v509 = vpop.f32.mrf.mxu0
        %v510 = vpop.f32.mrf.mxu0
        %511 = vdwg.mxu0
        %v512 = vld [vmem:[%s397] sm:$0xff]
        %v513 = vld [vmem:[%s401] sm:$0xff]
        %515 = vrot.lane.b32.xlu0 %v507, 120
        %v516 = vpop.permute.xlu0 %515
        %518 = vrot.lane.b32.xlu0 %v507, 112
        %v519 = vpop.permute.xlu0 %518
        %521 = vrot.lane.b32.xlu0 %v507, 104
        %v522 = vpop.permute.xlu0 %521
        %v524 = vcombine.low %v507, %v519
        %v525 = vcombine.high %v507, %v519
        %v527 = vunpack.c.l.s4 1983009808
        %v528 = vunpack.c.0.s8 %v527
        %v529 = vlaneseq
        %v530 = vshrl.u32 %v529, 7
        %v531 = vsub.s32 %v528, %v530
        %v532 = vrot.slane %v524, %v531
        %v534 = vunpack.c.l.s4 1983009808
        %v535 = vunpack.c.0.s8 %v534
        %v536 = vlaneseq
        %v537 = vshrl.u32 %v536, 7
        %v538 = vsub.s32 %v535, %v537
        %v539 = vrot.slane %v525, %v538
        %v540 = vcombine.low %v516, %v522
        %v541 = vcombine.high %v516, %v522
        %v543 = vunpack.c.l.s4 1983009808
        %v544 = vunpack.c.0.s8 %v543
        %v545 = vlaneseq
        %v546 = vshrl.u32 %v545, 7
        %v547 = vsub.s32 %v544, %v546
        %v548 = vrot.slane %v540, %v547
        %v550 = vunpack.c.l.s4 1983009808
        %v551 = vunpack.c.0.s8 %v550
        %v552 = vlaneseq
        %v553 = vshrl.u32 %v552, 7
        %v554 = vsub.s32 %v551, %v553
        %v555 = vrot.slane %v541, %v554
        %v556 = vcombine.low %v532, %v548
        %v557 = vcombine.high %v532, %v548
        %v559 = vunpack.c.l.s4 1934713408
        %v560 = vunpack.c.0.s8 %v559
        %v561 = vlaneseq
        %v562 = vshrl.u32 %v561, 7
        %v563 = vsub.s32 %v560, %v562
        %v564 = vrot.slane %v556, %v563
        %v566 = vunpack.c.l.s4 1934713408
        %v567 = vunpack.c.0.s8 %v566
        %v568 = vlaneseq
        %v569 = vshrl.u32 %v568, 7
        %v570 = vsub.s32 %v567, %v569
        %v571 = vrot.slane %v557, %v570
        %v572 = vcombine.low %v539, %v555
        %v573 = vcombine.high %v539, %v555
        %v575 = vunpack.c.l.s4 1934713408
        %v576 = vunpack.c.0.s8 %v575
        %v577 = vlaneseq
        %v578 = vshrl.u32 %v577, 7
        %v579 = vsub.s32 %v576, %v578
        %v580 = vrot.slane %v572, %v579
        %v582 = vunpack.c.l.s4 1934713408
        %v583 = vunpack.c.0.s8 %v582
        %v584 = vlaneseq
        %v585 = vshrl.u32 %v584, 7
        %v586 = vsub.s32 %v583, %v585
        %v587 = vrot.slane %v573, %v586
        %v588 = vcombine.high %v564, 0.0
        %v589 = vcombine.high %v571, 0.0
        %v590 = vcombine.high %v580, 0.0
        %v591 = vcombine.high %v587, 0.0
        %v592 = vsub.f32 0.0, %v564
        %v593 = vsub.f32 0.0, %v588
        %v594 = vsub.f32 0.0, %v571
        %v595 = vsub.f32 0.0, %v589
        %v596 = vsub.f32 0.0, %v580
        %v597 = vsub.f32 0.0, %v590
        %v598 = vsub.f32 0.0, %v587
        %v599 = vsub.f32 0.0, %v591
        %608 = vrot.lane.b32.xlu0 %v592, 124
        %v609 = vpop.permute.xlu0 %608
        %610 = vrot.lane.b32.xlu0 %v593, 124
        %v611 = vpop.permute.xlu0 %610
        %612 = vrot.lane.b32.xlu0 %v594, 124
        %v613 = vpop.permute.xlu0 %612
        %614 = vrot.lane.b32.xlu0 %v595, 124
        %v615 = vpop.permute.xlu0 %614
        %616 = vrot.lane.b32.xlu0 %v596, 124
        %v617 = vpop.permute.xlu0 %616
        %618 = vrot.lane.b32.xlu0 %v597, 124
        %v619 = vpop.permute.xlu0 %618
        %620 = vrot.lane.b32.xlu0 %v598, 124
        %v621 = vpop.permute.xlu0 %620
        %622 = vrot.lane.b32.xlu0 %v599, 124
        %v623 = vpop.permute.xlu0 %622
        %640 = vrot.lane.b32.xlu0 %v564, 4
        %v641 = vpop.permute.xlu0 %640
        %642 = vrot.lane.b32.xlu0 %v588, 4
        %v643 = vpop.permute.xlu0 %642
        %644 = vrot.lane.b32.xlu0 %v571, 4
        %v645 = vpop.permute.xlu0 %644
        %646 = vrot.lane.b32.xlu0 %v589, 4
        %v647 = vpop.permute.xlu0 %646
        %648 = vrot.lane.b32.xlu0 %v580, 4
        %v649 = vpop.permute.xlu0 %648
        %650 = vrot.lane.b32.xlu0 %v590, 4
        %v651 = vpop.permute.xlu0 %650
        %652 = vrot.lane.b32.xlu0 %v587, 4
        %v653 = vpop.permute.xlu0 %652
        %654 = vrot.lane.b32.xlu0 %v591, 4
        %v655 = vpop.permute.xlu0 %654
        %vm664 = vcmask 31744
        %v665 = vsel %vm664, %v609, %v641
        %v666 = vsel %vm664, %v611, %v643
        %v667 = vsel %vm664, %v613, %v645
        %v668 = vsel %vm664, %v615, %v647
        %v669 = vsel %vm664, %v617, %v649
        %v670 = vsel %vm664, %v619, %v651
        %v671 = vsel %vm664, %v621, %v653
        %v672 = vsel %vm664, %v623, %v655
        %v674 = vcombine.high %v512, %v512
        %v676 = vunpack.c.l.s4 1966171168
        %v677 = vunpack.c.0.s8 %v676
        %v678 = vlaneseq
        %v679 = vshrl.u32 %v678, 7
        %v680 = vsub.s32 %v677, %v679
        %v681 = vrot.slane %v512, %v680
        %v683 = vunpack.c.l.s4 1966171168
        %v684 = vunpack.c.0.s8 %v683
        %v685 = vlaneseq
        %v686 = vshrl.u32 %v685, 7
        %v687 = vsub.s32 %v684, %v686
        %v688 = vrot.slane %v674, %v687
        %v689 = vcombine.high %v681, %v681
        %v690 = vcombine.high %v688, %v688
        %v692 = vunpack.c.l.s4 1966171168
        %v693 = vunpack.c.0.s8 %v692
        %v694 = vlaneseq
        %v695 = vshrl.u32 %v694, 7
        %v696 = vsub.s32 %v693, %v695
        %v697 = vrot.slane %v681, %v696
        %v699 = vunpack.c.l.s4 1966171168
        %v700 = vunpack.c.0.s8 %v699
        %v701 = vlaneseq
        %v702 = vshrl.u32 %v701, 7
        %v703 = vsub.s32 %v700, %v702
        %v704 = vrot.slane %v688, %v703
        %v706 = vunpack.c.l.s4 1966171168
        %v707 = vunpack.c.0.s8 %v706
        %v708 = vlaneseq
        %v709 = vshrl.u32 %v708, 7
        %v710 = vsub.s32 %v707, %v709
        %v711 = vrot.slane %v689, %v710
        %v713 = vunpack.c.l.s4 1966171168
        %v714 = vunpack.c.0.s8 %v713
        %v715 = vlaneseq
        %v716 = vshrl.u32 %v715, 7
        %v717 = vsub.s32 %v714, %v716
        %v718 = vrot.slane %v690, %v717
        %v719 = vcombine.high %v697, %v697
        %v720 = vcombine.high %v704, %v704
        %v721 = vcombine.high %v711, %v711
        %v722 = vcombine.high %v718, %v718
        %v723 = vlaneseq
        %v724 = vshrl.u32 %v723, 7
        %v725 = vsub.s32 0, %v724
        %v726 = vrot.slane %v697, %v725
        %v727 = vlaneseq
        %v728 = vshrl.u32 %v727, 7
        %v729 = vsub.s32 0, %v728
        %v730 = vrot.slane %v711, %v729
        %v731 = vlaneseq
        %v732 = vshrl.u32 %v731, 7
        %v733 = vsub.s32 0, %v732
        %v734 = vrot.slane %v719, %v733
        %v735 = vlaneseq
        %v736 = vshrl.u32 %v735, 7
        %v737 = vsub.s32 0, %v736
        %v738 = vrot.slane %v721, %v737
        %v739 = vlaneseq
        %v740 = vshrl.u32 %v739, 7
        %v741 = vsub.s32 0, %v740
        %v742 = vrot.slane %v704, %v741
        %v743 = vlaneseq
        %v744 = vshrl.u32 %v743, 7
        %v745 = vsub.s32 0, %v744
        %v746 = vrot.slane %v718, %v745
        %v747 = vlaneseq
        %v748 = vshrl.u32 %v747, 7
        %v749 = vsub.s32 0, %v748
        %v750 = vrot.slane %v720, %v749
        %v751 = vlaneseq
        %v752 = vshrl.u32 %v751, 7
        %v753 = vsub.s32 0, %v752
        %v754 = vrot.slane %v722, %v753
        %v763 = vmul.f32 %v564, %v726
        %v764 = vmul.f32 %v588, %v730
        %v765 = vmul.f32 %v571, %v734
        %v766 = vmul.f32 %v589, %v738
        %v767 = vmul.f32 %v580, %v742
        %v768 = vmul.f32 %v590, %v746
        %v769 = vmul.f32 %v587, %v750
        %v770 = vmul.f32 %v591, %v754
        %v772 = vcombine.high %v513, %v513
        %v774 = vunpack.c.l.s4 1966171168
        %v775 = vunpack.c.0.s8 %v774
        %v776 = vlaneseq
        %v777 = vshrl.u32 %v776, 7
        %v778 = vsub.s32 %v775, %v777
        %v779 = vrot.slane %v513, %v778
        %v781 = vunpack.c.l.s4 1966171168
        %v782 = vunpack.c.0.s8 %v781
        %v783 = vlaneseq
        %v784 = vshrl.u32 %v783, 7
        %v785 = vsub.s32 %v782, %v784
        %v786 = vrot.slane %v772, %v785
        %v787 = vcombine.high %v779, %v779
        %v788 = vcombine.high %v786, %v786
        %v790 = vunpack.c.l.s4 1966171168
        %v791 = vunpack.c.0.s8 %v790
        %v792 = vlaneseq
        %v793 = vshrl.u32 %v792, 7
        %v794 = vsub.s32 %v791, %v793
        %v795 = vrot.slane %v779, %v794
        %v797 = vunpack.c.l.s4 1966171168
        %v798 = vunpack.c.0.s8 %v797
        %v799 = vlaneseq
        %v800 = vshrl.u32 %v799, 7
        %v801 = vsub.s32 %v798, %v800
        %v802 = vrot.slane %v786, %v801
        %v804 = vunpack.c.l.s4 1966171168
        %v805 = vunpack.c.0.s8 %v804
        %v806 = vlaneseq
        %v807 = vshrl.u32 %v806, 7
        %v808 = vsub.s32 %v805, %v807
        %v809 = vrot.slane %v787, %v808
        %v811 = vunpack.c.l.s4 1966171168
        %v812 = vunpack.c.0.s8 %v811
        %v813 = vlaneseq
        %v814 = vshrl.u32 %v813, 7
        %v815 = vsub.s32 %v812, %v814
        %v816 = vrot.slane %v788, %v815
        %v817 = vcombine.high %v795, %v795
        %v818 = vcombine.high %v802, %v802
        %v819 = vcombine.high %v809, %v809
        %v820 = vcombine.high %v816, %v816
        %v821 = vlaneseq
        %v822 = vshrl.u32 %v821, 7
        %v823 = vsub.s32 0, %v822
        %v824 = vrot.slane %v795, %v823
        %v825 = vlaneseq
        %v826 = vshrl.u32 %v825, 7
        %v827 = vsub.s32 0, %v826
        %v828 = vrot.slane %v809, %v827
        %v829 = vlaneseq
        %v830 = vshrl.u32 %v829, 7
        %v831 = vsub.s32 0, %v830
        %v832 = vrot.slane %v817, %v831
        %v833 = vlaneseq
        %v834 = vshrl.u32 %v833, 7
        %v835 = vsub.s32 0, %v834
        %v836 = vrot.slane %v819, %v835
        %v837 = vlaneseq
        %v838 = vshrl.u32 %v837, 7
        %v839 = vsub.s32 0, %v838
        %v840 = vrot.slane %v802, %v839
        %v841 = vlaneseq
        %v842 = vshrl.u32 %v841, 7
        %v843 = vsub.s32 0, %v842
        %v844 = vrot.slane %v816, %v843
        %v845 = vlaneseq
        %v846 = vshrl.u32 %v845, 7
        %v847 = vsub.s32 0, %v846
        %v848 = vrot.slane %v818, %v847
        %v849 = vlaneseq
        %v850 = vshrl.u32 %v849, 7
        %v851 = vsub.s32 0, %v850
        %v852 = vrot.slane %v820, %v851
        %v861 = vmul.f32 %v665, %v824
        %v862 = vmul.f32 %v666, %v828
        %v863 = vmul.f32 %v667, %v832
        %v864 = vmul.f32 %v668, %v836
        %v865 = vmul.f32 %v669, %v840
        %v866 = vmul.f32 %v670, %v844
        %v867 = vmul.f32 %v671, %v848
        %v868 = vmul.f32 %v672, %v852
        %v869 = vadd.f32 %v763, %v861
        %v870 = vadd.f32 %v764, %v862
        %v871 = vadd.f32 %v765, %v863
        %v872 = vadd.f32 %v766, %v864
        %v873 = vadd.f32 %v767, %v865
        %v874 = vadd.f32 %v768, %v866
        %v875 = vadd.f32 %v769, %v867
        %v876 = vadd.f32 %v770, %v868
        %v877 = vcombine.low %v869, %v871
        %v879 = vunpack.c.l.s4 1983009808
        %v880 = vunpack.c.0.s8 %v879
        %v881 = vlaneseq
        %v882 = vshrl.u32 %v881, 7
        %v883 = vsub.s32 %v880, %v882
        %v884 = vrot.slane %v877, %v883
        %v885 = vcombine.low %v870, %v872
        %v887 = vunpack.c.l.s4 1983009808
        %v888 = vunpack.c.0.s8 %v887
        %v889 = vlaneseq
        %v890 = vshrl.u32 %v889, 7
        %v891 = vsub.s32 %v888, %v890
        %v892 = vrot.slane %v885, %v891
        %v893 = vcombine.low %v873, %v875
        %v895 = vunpack.c.l.s4 1983009808
        %v896 = vunpack.c.0.s8 %v895
        %v897 = vlaneseq
        %v898 = vshrl.u32 %v897, 7
        %v899 = vsub.s32 %v896, %v898
        %v900 = vrot.slane %v893, %v899
        %v901 = vcombine.low %v874, %v876
        %v903 = vunpack.c.l.s4 1983009808
        %v904 = vunpack.c.0.s8 %v903
        %v905 = vlaneseq
        %v906 = vshrl.u32 %v905, 7
        %v907 = vsub.s32 %v904, %v906
        %v908 = vrot.slane %v901, %v907
        %v909 = vcombine.low %v884, %v892
        %v910 = vcombine.high %v884, %v892
        %v912 = vunpack.c.l.s4 1934713408
        %v913 = vunpack.c.0.s8 %v912
        %v914 = vlaneseq
        %v915 = vshrl.u32 %v914, 7
        %v916 = vsub.s32 %v913, %v915
        %v917 = vrot.slane %v909, %v916
        %v919 = vunpack.c.l.s4 1934713408
        %v920 = vunpack.c.0.s8 %v919
        %v921 = vlaneseq
        %v922 = vshrl.u32 %v921, 7
        %v923 = vsub.s32 %v920, %v922
        %v924 = vrot.slane %v910, %v923
        %v925 = vcombine.low %v900, %v908
        %v926 = vcombine.high %v900, %v908
        %v928 = vunpack.c.l.s4 1934713408
        %v929 = vunpack.c.0.s8 %v928
        %v930 = vlaneseq
        %v931 = vshrl.u32 %v930, 7
        %v932 = vsub.s32 %v929, %v931
        %v933 = vrot.slane %v925, %v932
        %v935 = vunpack.c.l.s4 1934713408
        %v936 = vunpack.c.0.s8 %v935
        %v937 = vlaneseq
        %v938 = vshrl.u32 %v937, 7
        %v939 = vsub.s32 %v936, %v938
        %v940 = vrot.slane %v926, %v939
        %v941 = vcombine.low %v917, %v933
        %v942 = vcombine.high %v917, %v933
        %v943 = vcombine.low %v924, %v940
        %v944 = vcombine.high %v924, %v940
        %946 = vrot.lane.b32.xlu0 %v942, 8
        %v947 = vpop.permute.xlu0 %946
        %950 = vrot.lane.b32.xlu0 %v943, 16
        %v951 = vpop.permute.xlu0 %950
        %954 = vrot.lane.b32.xlu0 %v944, 24
        %v955 = vpop.permute.xlu0 %954
        %vm957 = vcmask 64512
        %v958 = vsel %vm957, %v941, %v947
        %vm959 = vcmask 130048
        %v960 = vsel %vm959, %v958, %v951
        %vm961 = vcmask 195584
        %v962 = vsel %vm961, %v960, %v955
        %v963 = vpack.c.bf16 %v962, %v962
        %vm964 = vcmask 257024
        %965 = vst.msk [vmem:[%s367] sm:$0xf] %vm964, %v963
        %966 = vrot.lane.b32.xlu0 %v507, 96
        %v967 = vpop.permute.xlu0 %966
        %968 = vrot.lane.b32.xlu0 %v516, 96
        %v969 = vpop.permute.xlu0 %968
        %970 = vrot.lane.b32.xlu0 %v519, 96
        %v971 = vpop.permute.xlu0 %970
        %972 = vrot.lane.b32.xlu0 %v522, 96
        %v973 = vpop.permute.xlu0 %972
        %v978 = vcombine.low %v967, %v971
        %v979 = vcombine.high %v967, %v971
        %v981 = vunpack.c.l.s4 1983009808
        %v982 = vunpack.c.0.s8 %v981
        %v983 = vlaneseq
        %v984 = vshrl.u32 %v983, 7
        %v985 = vsub.s32 %v982, %v984
        %v986 = vrot.slane %v978, %v985
        %v988 = vunpack.c.l.s4 1983009808
        %v989 = vunpack.c.0.s8 %v988
        %v990 = vlaneseq
        %v991 = vshrl.u32 %v990, 7
        %v992 = vsub.s32 %v989, %v991
        %v993 = vrot.slane %v979, %v992
        %v994 = vcombine.low %v969, %v973
        %v995 = vcombine.high %v969, %v973
        %v997 = vunpack.c.l.s4 1983009808
        %v998 = vunpack.c.0.s8 %v997
        %v999 = vlaneseq
        %v1000 = vshrl.u32 %v999, 7
        %v1001 = vsub.s32 %v998, %v1000
        %v1002 = vrot.slane %v994, %v1001
        %v1004 = vunpack.c.l.s4 1983009808
        %v1005 = vunpack.c.0.s8 %v1004
        %v1006 = vlaneseq
        %v1007 = vshrl.u32 %v1006, 7
        %v1008 = vsub.s32 %v1005, %v1007
        %v1009 = vrot.slane %v995, %v1008
        %v1010 = vcombine.low %v986, %v1002
        %v1011 = vcombine.high %v986, %v1002
        %v1013 = vunpack.c.l.s4 1934713408
        %v1014 = vunpack.c.0.s8 %v1013
        %v1015 = vlaneseq
        %v1016 = vshrl.u32 %v1015, 7
        %v1017 = vsub.s32 %v1014, %v1016
        %v1018 = vrot.slane %v1010, %v1017
        %v1020 = vunpack.c.l.s4 1934713408
        %v1021 = vunpack.c.0.s8 %v1020
        %v1022 = vlaneseq
        %v1023 = vshrl.u32 %v1022, 7
        %v1024 = vsub.s32 %v1021, %v1023
        %v1025 = vrot.slane %v1011, %v1024
        %v1026 = vcombine.low %v993, %v1009
        %v1027 = vcombine.high %v993, %v1009
        %v1029 = vunpack.c.l.s4 1934713408
        %v1030 = vunpack.c.0.s8 %v1029
        %v1031 = vlaneseq
        %v1032 = vshrl.u32 %v1031, 7
        %v1033 = vsub.s32 %v1030, %v1032
        %v1034 = vrot.slane %v1026, %v1033
        %v1036 = vunpack.c.l.s4 1934713408
        %v1037 = vunpack.c.0.s8 %v1036
        %v1038 = vlaneseq
        %v1039 = vshrl.u32 %v1038, 7
        %v1040 = vsub.s32 %v1037, %v1039
        %v1041 = vrot.slane %v1027, %v1040
        %v1042 = vcombine.high %v1018, 0.0
        %v1043 = vcombine.high %v1025, 0.0
        %v1044 = vcombine.high %v1034, 0.0
        %v1045 = vcombine.high %v1041, 0.0
        %v1046 = vsub.f32 0.0, %v1018
        %v1047 = vsub.f32 0.0, %v1042
        %v1048 = vsub.f32 0.0, %v1025
        %v1049 = vsub.f32 0.0, %v1043
        %v1050 = vsub.f32 0.0, %v1034
        %v1051 = vsub.f32 0.0, %v1044
        %v1052 = vsub.f32 0.0, %v1041
        %v1053 = vsub.f32 0.0, %v1045
        %1062 = vrot.lane.b32.xlu0 %v1046, 124
        %v1063 = vpop.permute.xlu0 %1062
        %1064 = vrot.lane.b32.xlu0 %v1047, 124
        %v1065 = vpop.permute.xlu0 %1064
        %1066 = vrot.lane.b32.xlu0 %v1048, 124
        %v1067 = vpop.permute.xlu0 %1066
        %1068 = vrot.lane.b32.xlu0 %v1049, 124
        %v1069 = vpop.permute.xlu0 %1068
        %1070 = vrot.lane.b32.xlu0 %v1050, 124
        %v1071 = vpop.permute.xlu0 %1070
        %1072 = vrot.lane.b32.xlu0 %v1051, 124
        %v1073 = vpop.permute.xlu0 %1072
        %1074 = vrot.lane.b32.xlu0 %v1052, 124
        %v1075 = vpop.permute.xlu0 %1074
        %1076 = vrot.lane.b32.xlu0 %v1053, 124
        %v1077 = vpop.permute.xlu0 %1076
        %1094 = vrot.lane.b32.xlu0 %v1018, 4
        %v1095 = vpop.permute.xlu0 %1094
        %1096 = vrot.lane.b32.xlu0 %v1042, 4
        %v1097 = vpop.permute.xlu0 %1096
        %1098 = vrot.lane.b32.xlu0 %v1025, 4
        %v1099 = vpop.permute.xlu0 %1098
        %1100 = vrot.lane.b32.xlu0 %v1043, 4
        %v1101 = vpop.permute.xlu0 %1100
        %1102 = vrot.lane.b32.xlu0 %v1034, 4
        %v1103 = vpop.permute.xlu0 %1102
        %1104 = vrot.lane.b32.xlu0 %v1044, 4
        %v1105 = vpop.permute.xlu0 %1104
        %1106 = vrot.lane.b32.xlu0 %v1041, 4
        %v1107 = vpop.permute.xlu0 %1106
        %1108 = vrot.lane.b32.xlu0 %v1045, 4
        %v1109 = vpop.permute.xlu0 %1108
        %v1118 = vsel %vm664, %v1063, %v1095
        %v1119 = vsel %vm664, %v1065, %v1097
        %v1120 = vsel %vm664, %v1067, %v1099
        %v1121 = vsel %vm664, %v1069, %v1101
        %v1122 = vsel %vm664, %v1071, %v1103
        %v1123 = vsel %vm664, %v1073, %v1105
        %v1124 = vsel %vm664, %v1075, %v1107
        %v1125 = vsel %vm664, %v1077, %v1109
        %v1126 = vmul.f32 %v1018, %v726
        %v1127 = vmul.f32 %v1042, %v730
        %v1128 = vmul.f32 %v1025, %v734
        %v1129 = vmul.f32 %v1043, %v738
        %v1130 = vmul.f32 %v1034, %v742
        %v1131 = vmul.f32 %v1044, %v746
        %v1132 = vmul.f32 %v1041, %v750
        %v1133 = vmul.f32 %v1045, %v754
        %v1134 = vmul.f32 %v1118, %v824
        %v1135 = vmul.f32 %v1119, %v828
        %v1136 = vmul.f32 %v1120, %v832
        %v1137 = vmul.f32 %v1121, %v836
        %v1138 = vmul.f32 %v1122, %v840
        %v1139 = vmul.f32 %v1123, %v844
        %v1140 = vmul.f32 %v1124, %v848
        %v1141 = vmul.f32 %v1125, %v852
        %v1142 = vadd.f32 %v1126, %v1134
        %v1143 = vadd.f32 %v1127, %v1135
        %v1144 = vadd.f32 %v1128, %v1136
        %v1145 = vadd.f32 %v1129, %v1137
        %v1146 = vadd.f32 %v1130, %v1138
        %v1147 = vadd.f32 %v1131, %v1139
        %v1148 = vadd.f32 %v1132, %v1140
        %v1149 = vadd.f32 %v1133, %v1141
        %v1150 = vcombine.low %v1142, %v1144
        %v1152 = vunpack.c.l.s4 1983009808
        %v1153 = vunpack.c.0.s8 %v1152
        %v1154 = vlaneseq
        %v1155 = vshrl.u32 %v1154, 7
        %v1156 = vsub.s32 %v1153, %v1155
        %v1157 = vrot.slane %v1150, %v1156
        %v1158 = vcombine.low %v1143, %v1145
        %v1160 = vunpack.c.l.s4 1983009808
        %v1161 = vunpack.c.0.s8 %v1160
        %v1162 = vlaneseq
        %v1163 = vshrl.u32 %v1162, 7
        %v1164 = vsub.s32 %v1161, %v1163
        %v1165 = vrot.slane %v1158, %v1164
        %v1166 = vcombine.low %v1146, %v1148
        %v1168 = vunpack.c.l.s4 1983009808
        %v1169 = vunpack.c.0.s8 %v1168
        %v1170 = vlaneseq
        %v1171 = vshrl.u32 %v1170, 7
        %v1172 = vsub.s32 %v1169, %v1171
        %v1173 = vrot.slane %v1166, %v1172
        %v1174 = vcombine.low %v1147, %v1149
        %v1176 = vunpack.c.l.s4 1983009808
        %v1177 = vunpack.c.0.s8 %v1176
        %v1178 = vlaneseq
        %v1179 = vshrl.u32 %v1178, 7
        %v1180 = vsub.s32 %v1177, %v1179
        %v1181 = vrot.slane %v1174, %v1180
        %v1182 = vcombine.low %v1157, %v1165
        %v1183 = vcombine.high %v1157, %v1165
        %v1185 = vunpack.c.l.s4 1934713408
        %v1186 = vunpack.c.0.s8 %v1185
        %v1187 = vlaneseq
        %v1188 = vshrl.u32 %v1187, 7
        %v1189 = vsub.s32 %v1186, %v1188
        %v1190 = vrot.slane %v1182, %v1189
        %v1192 = vunpack.c.l.s4 1934713408
        %v1193 = vunpack.c.0.s8 %v1192
        %v1194 = vlaneseq
        %v1195 = vshrl.u32 %v1194, 7
        %v1196 = vsub.s32 %v1193, %v1195
        %v1197 = vrot.slane %v1183, %v1196
        %v1198 = vcombine.low %v1173, %v1181
        %v1199 = vcombine.high %v1173, %v1181
        %v1201 = vunpack.c.l.s4 1934713408
        %v1202 = vunpack.c.0.s8 %v1201
        %v1203 = vlaneseq
        %v1204 = vshrl.u32 %v1203, 7
        %v1205 = vsub.s32 %v1202, %v1204
        %v1206 = vrot.slane %v1198, %v1205
        %v1208 = vunpack.c.l.s4 1934713408
        %v1209 = vunpack.c.0.s8 %v1208
        %v1210 = vlaneseq
        %v1211 = vshrl.u32 %v1210, 7
        %v1212 = vsub.s32 %v1209, %v1211
        %v1213 = vrot.slane %v1199, %v1212
        %v1214 = vcombine.low %v1190, %v1206
        %v1215 = vcombine.high %v1190, %v1206
        %v1216 = vcombine.low %v1197, %v1213
        %v1217 = vcombine.high %v1197, %v1213
        %1219 = vrot.lane.b32.xlu0 %v1215, 8
        %v1220 = vpop.permute.xlu0 %1219
        %1223 = vrot.lane.b32.xlu0 %v1216, 16
        %v1224 = vpop.permute.xlu0 %1223
        %1227 = vrot.lane.b32.xlu0 %v1217, 24
        %v1228 = vpop.permute.xlu0 %1227
        %v1230 = vsel %vm957, %v1214, %v1220
        %v1231 = vsel %vm959, %v1230, %v1224
        %v1232 = vsel %vm961, %v1231, %v1228
        %v1233 = vpack.c.bf16 %v1232, %v1232
        %1234 = vst.msk [vmem:[%s374] sm:$0xf] %vm964, %v1233
        %v1235 = vpack.c.bf16 %v507, %v507
        %v1237 = vunpack.c.l.b16 %v1235
        %v1238 = vpack.c.b16 %v1237, %v1237
        %1239 = vrot.lane.b32.xlu0 %v1238, 64
        %v1240 = vpop.permute.xlu0 %1239
        %1242 = vst.msk [vmem:[%s381] sm:$0xf] %vm964, %v1240
        %s1243 = sand.u32 %s196, 1
        %s1244 = scalar_lea.sflag [#allocation3], %s1243
        %s1245 = sand.u32 %s196, 1
        %s1246 = smul.addr %s1245, 4
        %s1247 = scalar_lea.vmem [#allocation2], %s1246
        %s1248 = sand.u32 %s26, 1
        %s1249 = scalar_lea.sflag [#allocation5], %s1248
        %s1250 = sand.u32 %s224, 1
        %s1251 = smul.addr %s1250, 4
        %s1252 = scalar_lea.vmem [#allocation4], %s1251
        %s1253 = sand.u32 %s26, 1
        %s1254 = scalar_lea.sflag [#allocation5], %s1253
        %s1255 = sand.u32 %s252, 1
        %s1256 = smul.addr %s1255, 4
        %s1257 = scalar_lea.vmem [#allocation6], %s1256
        // Predicated region
        $region45: #{tpu_custom_call.1} parent=43 // pred_check
          %p1258 = pneg %p206
        $region46: #{tpu_custom_call.1} parent=43 // pred_check_branch
          %1260 = sbr.rel (%p1258) target = $region48
        $region47: #{tpu_custom_call.1} parent=43 // pred_region
          %s1262 = ssub.s32 64, 64
          %1263 = vsyncadd %s1244, %s1262
          %s1264 = smul.addr %s30, 2
          %s1265 = sadd.s32 %s31, %s1264
          %s1266 = smul.addr %s1265, 64
          %s1267 = scalar_lea.hbm %s6, %s1266
          %s1269 = sshll.u32 %s1247, 4
          %s1270 = int_to_ptr.vmem [resolvable:$true] %s1269
          %1272 = dma.vmem_to_hbm [thread:$0]  %s1270, 64, %s1267, %s1244
        $region48: #{tpu_custom_call.1} parent=43 // pred_fallthru
          _
        // Predicated region
        $region49: #{tpu_custom_call.1} parent=43 // pred_check
          %p1273 = pneg %p234
        $region50: #{tpu_custom_call.1} parent=43 // pred_check_branch
          %1275 = sbr.rel (%p1273) target = $region52
        $region51: #{tpu_custom_call.1} parent=43 // pred_region
          %s1277 = ssub.s32 64, 64
          %1278 = vsyncadd %s1249, %s1277
          %s1279 = smul.addr %s30, 2
          %s1280 = sadd.s32 %s31, %s1279
          %s1281 = smul.addr %s1280, 64
          %s1282 = scalar_lea.hbm %s7, %s1281
          %s1284 = sshll.u32 %s1252, 4
          %s1285 = int_to_ptr.vmem [resolvable:$true] %s1284
          %1287 = dma.vmem_to_hbm [thread:$0]  %s1285, 64, %s1282, %s1249
        $region52: #{tpu_custom_call.1} parent=43 // pred_fallthru
          _
        // Predicated region
        $region53: #{tpu_custom_call.1} parent=43 // pred_check
          %p1288 = pneg %p262
        $region54: #{tpu_custom_call.1} parent=43 // pred_check_branch
          %1290 = sbr.rel (%p1288) target = $region56
        $region55: #{tpu_custom_call.1} parent=43 // pred_region
          %s1292 = ssub.s32 64, 64
          %1293 = vsyncadd %s1254, %s1292
          %s1294 = smul.addr %s30, 2
          %s1295 = sadd.s32 %s31, %s1294
          %s1296 = smul.addr %s1295, 64
          %s1297 = scalar_lea.hbm %s8, %s1296
          %s1299 = sshll.u32 %s1257, 4
          %s1300 = int_to_ptr.vmem [resolvable:$true] %s1299
          %1302 = dma.vmem_to_hbm [thread:$0]  %s1300, 64, %s1297, %s1254
        $region56: #{tpu_custom_call.1} parent=43 // pred_fallthru
          _
      $region44: #{tpu_custom_call.1} parent=5 // pred_fallthru
        _
      %p1303 = scmp.le.s32.totalorder 2, %s21
      // Predicated region
      $region57: #{tpu_custom_call.1} parent=5 // pred_check
        %p1304 = pneg %p1303
      $region58: #{tpu_custom_call.1} parent=5 // pred_check_branch
        %1306 = sbr.rel (%p1304) target = $region60
      $region59: #{tpu_custom_call.1} parent=5 // pred_region
        %s1307 = ssub.s32 %s21, 2
        // Predicated region
        $region61: #{tpu_custom_call.1} parent=59 // pred_check
          %p1308 = pneg %p212
        $region62: #{tpu_custom_call.1} parent=59 // pred_check_branch
          %1310 = sbr.rel (%p1308) target = $region64
        $region63: #{tpu_custom_call.1} parent=59 // pred_region
          %s1311 = sand.u32 %s197, 1
          %s1312 = scalar_lea.sflag [#allocation3], %s1311
          %s1313 = sand.u32 %s197, 1
          %s1314 = smul.addr %s1313, 4
          %s1315 = scalar_lea.vmem [#allocation2], %s1314
          %1316 = dma.done %s1312, 64
        $region64: #{tpu_custom_call.1} parent=59 // pred_fallthru
          _
        // Predicated region
        $region65: #{tpu_custom_call.1} parent=59 // pred_check
          %p1317 = pneg %p240
        $region66: #{tpu_custom_call.1} parent=59 // pred_check_branch
          %1319 = sbr.rel (%p1317) target = $region68
        $region67: #{tpu_custom_call.1} parent=59 // pred_region
          %s1320 = sand.u32 %s27, 1
          %s1321 = scalar_lea.sflag [#allocation5], %s1320
          %s1322 = sand.u32 %s225, 1
          %s1323 = smul.addr %s1322, 4
          %s1324 = scalar_lea.vmem [#allocation4], %s1323
          %1325 = dma.done %s1321, 64
        $region68: #{tpu_custom_call.1} parent=59 // pred_fallthru
          _
        // Predicated region
        $region69: #{tpu_custom_call.1} parent=59 // pred_check
          %p1326 = pneg %p268
        $region70: #{tpu_custom_call.1} parent=59 // pred_check_branch
          %1328 = sbr.rel (%p1326) target = $region72
        $region71: #{tpu_custom_call.1} parent=59 // pred_region
          %s1329 = sand.u32 %s27, 1
          %s1330 = scalar_lea.sflag [#allocation5], %s1329
          %s1331 = sand.u32 %s253, 1
          %s1332 = smul.addr %s1331, 4
          %s1333 = scalar_lea.vmem [#allocation6], %s1332
          %1334 = dma.done %s1330, 64
        $region72: #{tpu_custom_call.1} parent=59 // pred_fallthru
          _
      $region60: #{tpu_custom_call.1} parent=5 // pred_fallthru
        _
    $region6: #{tpu_custom_call.1} parent=1 // loop_footer
      %s25 = sadd.s32 1, %s21
    $region7: #{tpu_custom_call.1} parent=1 // loop_footer_branch
      %20 = sbr.rel target = $region3
    $region8: #{tpu_custom_call.1} parent=1 // loop_exit
      _
    %1335 = vsyncpa [#allocation3], 1
    %s1336 = scalar_lea.sflag [#allocation3], 1
    %1337 = vsyncpa %s1336, 1
    %1338 = vsyncpa [#allocation5], 1
    %s1339 = scalar_lea.sflag [#allocation5], 1
    %1340 = vsyncpa %s1339, 1

</llo_original>
